<compile_context>
chip_gen: v6e
topology: v6e:2x2x1
jax: 0.10.0
libtpu: 0.0.40
codegen_flags: <defaults>
</compile_context>

<pallas_src>
import functools

import jax
import jax.numpy as jnp
from jax.experimental import pallas as pl
from jax.experimental.pallas import tpu as pltpu


def _round_up(x, m):
    return (x + m - 1) // m * m


# Only worth (and only risk) single-buffering for operands large enough to
# matter for VMEM (v7x has 64 MiB).  Small operands keep default buffering.
_SINGLE_BUFFER_MIN_BYTES = 2 * 1024 * 1024


def _resident_spec(shape, index_map, nbytes):
    """BlockSpec for a grid-invariant operand; single-buffer it when large."""
    if nbytes >= _SINGLE_BUFFER_MIN_BYTES:
        try:
            return pl.BlockSpec(shape, index_map, pipeline_mode=pl.Buffered(1))
        except (TypeError, ValueError, AttributeError):
            pass  # older jax without pipeline_mode / Buffered(1) support
    return pl.BlockSpec(shape, index_map)


def _buf_count(nbytes):
    return 1 if nbytes >= _SINGLE_BUFFER_MIN_BYTES else 2


# ----------------------------------------------------------------------------
# Kernels
# ----------------------------------------------------------------------------
def _head_kernel_fused(x_ref, w1_ref, b1_ref, w2_ref, b2_ref, o_ref, *,
                       tanh_dtype):
    # x_ref:  (tm, D)     activation tile (streamed, double-buffered)
    # w1_ref: (D, D)      dense weight [in, out], pre-cast, VMEM-resident
    # b1_ref: (1, D)      dense bias (f32)
    # w2_ref: (D, L_pad)  out_proj weight [in, out], lane-padded, resident
    # b2_ref: (1, L_pad)  out_proj bias (f32), lane-padded
    # o_ref:  (tm, L_pad) lane-dense logits tile
    x = x_ref[...].astype(w1_ref.dtype)
    # dropout (eval mode) == identity
    h = jnp.dot(x, w1_ref[...], preferred_element_type=jnp.float32)
    h = h + b1_ref[...].astype(jnp.float32)
    h = jnp.tanh(h.astype(tanh_dtype))
    # dropout (eval mode) == identity
    out = jnp.dot(h.astype(w2_ref.dtype), w2_ref[...],
                  preferred_element_type=jnp.float32)
    out = out + b2_ref[...].astype(jnp.float32)
    o_ref[...] = out.astype(o_ref.dtype)


def _head_kernel_ktiled(x_ref, w1_ref, b1_ref, w2_ref, b2_ref, o_ref, acc_ref,
                        *, tanh_dtype):
    # d_model contraction split over grid axis 1 ("arbitrary"); f32 accumulator
    # in VMEM scratch.  x_ref: (tm, tk), w1_ref: (tk, D), acc_ref: (tm, D) f32.
    k = pl.program_id(1)
    x = x_ref[...].astype(w1_ref.dtype)
    part = jnp.dot(x, w1_ref[...], preferred_element_type=jnp.float32)

    @pl.when(k == 0)
    def _init():
        acc_ref[...] = part

    @pl.when(k > 0)
    def _accum():
        acc_ref[...] += part

    @pl.when(k == pl.num_programs(1) - 1)
    def _finalize():
        h = acc_ref[...] + b1_ref[...].astype(jnp.float32)
        h = jnp.tanh(h.astype(tanh_dtype))
        out = jnp.dot(h.astype(w2_ref.dtype), w2_ref[...],
                      preferred_element_type=jnp.float32)
        out = out + b2_ref[...].astype(jnp.float32)
        o_ref[...] = out.astype(o_ref.dtype)


# ----------------------------------------------------------------------------
# One-time parameter preparation (model-load time, NOT the per-call hot path)
# ----------------------------------------------------------------------------
def prepare_t5_head_params(w_dense, b_dense, w_out, b_out, *,
                           matmul_dtype=jnp.bfloat16, lane_multiple=128):
    """Transpose nn.Linear [out, in] -> [in, out], lane-pad out_proj to a
    multiple of 128, and pre-cast weights to `matmul_dtype` (default bf16:
    MXU-native on v5e/v6e/v7x).  Biases stay f32 (added post f32-accumulation).
    Pass matmul_dtype=None to keep full-precision weights."""
    d_model = w_dense.shape[1]
    num_labels = w_out.shape[0]
    l_pad = _round_up(max(num_labels, 1), lane_multiple)
    w_dtype = matmul_dtype if matmul_dtype is not None else w_dense.dtype

    w1 = jnp.transpose(w_dense).astype(w_dtype)                       # (D, D)
    b1 = b_dense.reshape(1, d_model).astype(jnp.float32)              # (1, D)
    w2 = jnp.zeros((d_model, l_pad), dtype=w_dtype)
    w2 = w2.at[:, :num_labels].set(jnp.transpose(w_out).astype(w_dtype))
    b2 = jnp.zeros((1, l_pad), dtype=jnp.float32)
    b2 = b2.at[:, :num_labels].set(
        b_out.reshape(1, num_labels).astype(jnp.float32))
    return w1, b1, w2, b2, num_labels


# ----------------------------------------------------------------------------
# Tiling / dtype policy helpers (trace-time Python, static shapes)
# ----------------------------------------------------------------------------
def _choose_tm(m, act_itemsize):
    if m < 512:
        sub = 16 if act_itemsize == 2 else 8   # full bf16 vreg packing
        return _round_up(max(m, 1), sub)
    best_tm, best_key = None, None
    for cand in (512, 256, 128):
        m_pad = _round_up(m, cand)
        steps = m_pad // cand
        # minimize padding waste, then prefer >=2 grid steps (v7x megacore),
        # then prefer the larger tile.
        key = (m_pad - m, 0 if steps >= 2 else 1, -cand)
        if best_key is None or key < best_key:
            best_tm, best_key = cand, key
    return best_tm


def _choose_tk(d_model, weight_itemsize, max_resident_w1_bytes):
    if d_model * d_model * weight_itemsize <= max_resident_w1_bytes:
        return d_model                          # keep W1 fully resident
    for cand in (1024, 512, 256, 128):
        if cand < d_model and d_model % cand == 0:
            return cand
    return d_model                              # fallback: resident anyway


def _tanh_dtype_for(matmul_dtype):
    if jnp.dtype(matmul_dtype).itemsize != 2:
        return jnp.float32
    try:
        kind = jax.devices()[0].device_kind.lower()
    except Exception:  # pragma: no cover
        kind = ""
    # bf16 VPU/EUP exists on v6e/v7x; v5e keeps tanh in f32.
    if ("v6" in kind) or ("v7" in kind):
        return matmul_dtype
    return jnp.float32


def _physical_vmem_bytes():
    try:
        return int(pltpu.get_tpu_info().vmem_capacity_bytes)
    except Exception:  # pragma: no cover
        return 128 * 1024 * 1024


# ----------------------------------------------------------------------------
# Forward
# ----------------------------------------------------------------------------
@functools.partial(jax.jit, static_argnames=("num_labels", "max_resident_w1_bytes"))
def t5_classification_head(hidden_states, w1, b1, w2, b2, *, num_labels,
                           max_resident_w1_bytes=16 * 1024 * 1024):
    """hidden_states: [..., D]; returns logits [..., num_labels].
    w1/b1/w2/b2 must come from prepare_t5_head_params (pre-transposed,
    pre-cast, lane-padded).  Inference mode (dropout == identity)."""
    orig_shape = hidden_states.shape
    d_model = orig_shape[-1]
    l_pad = w2.shape[1]
    act_bytes = jnp.dtype(hidden_states.dtype).itemsize
    w_bytes = jnp.dtype(w1.dtype).itemsize

    x = hidden_states.reshape(-1, d_model)                    # (M, D)
    m = x.shape[0]

    tm = _choose_tm(m, act_bytes)
    m_pad = _round_up(m, tm)
    if m_pad != m:
        x = jnp.pad(x, ((0, m_pad - m), (0, 0)))

    tk = _choose_tk(d_model, w_bytes, max_resident_w1_bytes)
    n_k = d_model // tk
    tanh_dtype = _tanh_dtype_for(w1.dtype)

    cost = pl.CostEstimate(
        flops=2 * m_pad * d_model * d_model + 2 * m_pad * d_model * l_pad,
        transcendentals=m_pad * d_model,
        bytes_accessed=(m_pad * d_model * act_bytes
                        + d_model * d_model * w_bytes + d_model * 4
                        + d_model * l_pad * w_bytes + l_pad * 4
                        + m_pad * l_pad * act_bytes),
    )

    w1_res_bytes = d_model * d_model * w_bytes
    w2_res_bytes = d_model * l_pad * w_bytes
    if n_k == 1:
        w1_buf = _buf_count(w1_res_bytes) * w1_res_bytes
        x_buf = 2 * tm * d_model * act_bytes
        acc_bytes = 0
    else:
        w1_buf = 2 * tk * d_model * w_bytes        # streamed K-slices
        x_buf = 2 * tm * tk * act_bytes
        acc_bytes = tm * d_model * 4
    vmem_bytes = (x_buf + w1_buf
                  + _buf_count(w2_res_bytes) * w2_res_bytes
                  + 2 * (d_model + l_pad) * 4
                  + 2 * tm * l_pad * act_bytes
                  + acc_bytes + (2 << 20))
    phys_vmem = _physical_vmem_bytes()
    vmem_limit = int(min(max(vmem_bytes, 32 * 1024 * 1024),
                         phys_vmem - (8 << 20)))

    if n_k == 1:
        kernel = functools.partial(_head_kernel_fused, tanh_dtype=tanh_dtype)
        out = pl.pallas_call(
            kernel,
            out_shape=jax.ShapeDtypeStruct((m_pad, l_pad), hidden_states.dtype),
            grid=(m_pad // tm,),
            in_specs=[
                pl.BlockSpec((tm, d_model), lambda i: (i, 0)),               # x tile
                _resident_spec((d_model, d_model), lambda i: (0, 0),
                               w1_res_bytes),                                # W1
                _resident_spec((1, d_model), lambda i: (0, 0), d_model * 4), # b1
                _resident_spec((d_model, l_pad), lambda i: (0, 0),
                               w2_res_bytes),                                # W2
                _resident_spec((1, l_pad), lambda i: (0, 0), l_pad * 4),     # b2
            ],
            out_specs=pl.BlockSpec((tm, l_pad), lambda i: (i, 0)),
            compiler_params=pltpu.CompilerParams(
                dimension_semantics=("parallel",),
                vmem_limit_bytes=vmem_limit),
            cost_estimate=cost,
        )(x, w1, b1, w2, b2)
    else:
        kernel = functools.partial(_head_kernel_ktiled, tanh_dtype=tanh_dtype)
        out = pl.pallas_call(
            kernel,
            out_shape=jax.ShapeDtypeStruct((m_pad, l_pad), hidden_states.dtype),
            grid=(m_pad // tm, n_k),
            in_specs=[
                pl.BlockSpec((tm, tk), lambda i, k: (i, k)),                 # x tile
                pl.BlockSpec((tk, d_model), lambda i, k: (k, 0)),            # W1 K-slice
                _resident_spec((1, d_model), lambda i, k: (0, 0), d_model * 4),
                _resident_spec((d_model, l_pad), lambda i, k: (0, 0),
                               w2_res_bytes),
                _resident_spec((1, l_pad), lambda i, k: (0, 0), l_pad * 4),
            ],
            out_specs=pl.BlockSpec((tm, l_pad), lambda i, k: (i, 0)),
            scratch_shapes=[pltpu.VMEM((tm, d_model), jnp.float32)],
            compiler_params=pltpu.CompilerParams(
                dimension_semantics=("parallel", "arbitrary"),
                vmem_limit_bytes=vmem_limit),
            cost_estimate=cost,
        )(x, w1, b1, w2, b2)

    out = out[:m, :num_labels]
    return out.reshape(orig_shape[:-1] + (num_labels,))


# ----------------------------------------------------------------------------
# Reference (PyTorch forward semantics, eval mode) and self-test
# ----------------------------------------------------------------------------
def _reference(hidden_states, w_dense, b_dense, w_out, b_out):
    h = jnp.einsum("...d,od->...o", hidden_states, w_dense) + b_dense
    h = jnp.tanh(h)
    return jnp.einsum("...d,od->...o", h, w_out) + b_out


if __name__ == "__main__":
    key = jax.random.PRNGKey(0)

    # ---- Case 1: module-consistent small shapes (fused resident-W1 path) ----
    B, S, D, L = 2, 8, 32, 4
    k_x, k_w1, k_b1, k_w2, k_b2, k_rest = jax.random.split(key, 6)
    hidden_states = jax.random.normal(k_x, (B, S, D), dtype=jnp.float32)
    w_dense = jax.random.normal(k_w1, (D, D), dtype=jnp.float32) * 0.05
    b_dense = jax.random.normal(k_b1, (D,), dtype=jnp.float32) * 0.05
    w_out = jax.random.normal(k_w2, (L, D), dtype=jnp.float32) * 0.05
    b_out = jax.random.normal(k_b2, (L,), dtype=jnp.float32) * 0.05
    ref = _reference(hidden_states, w_dense, b_dense, w_out, b_out)

    # f32-weight path, tight tolerance.
    w1, b1, w2, b2, nl = prepare_t5_head_params(w_dense, b_dense, w_out, b_out,
                                                matmul_dtype=None)
    logits_f32 = t5_classification_head(hidden_states, w1, b1, w2, b2,
                                        num_labels=nl)
    jax.block_until_ready(logits_f32)
    assert logits_f32.shape == (B, S, L), logits_f32.shape
    assert jnp.allclose(logits_f32, ref, atol=1e-4, rtol=1e-4), "f32 path mismatch"

    # Default bf16-matmul path (f32 accumulation), looser tolerance.
    w1, b1, w2, b2, nl = prepare_t5_head_params(w_dense, b_dense, w_out, b_out)
    logits_bf16 = t5_classification_head(hidden_states, w1, b1, w2, b2,
                                         num_labels=nl)
    jax.block_until_ready(logits_bf16)
    assert logits_bf16.shape == (B, S, L), logits_bf16.shape
    assert jnp.allclose(logits_bf16, ref, atol=3e-2, rtol=3e-2), "bf16 path mismatch"

    # ---- Case 2: force the K-tiled (split d_model) path used for large D ----
    D2, L2, B2, S2 = 256, 3, 2, 4
    k_x2, k_w12, k_b12, k_w22, k_b22 = jax.random.split(k_rest, 5)
    hs2 = jax.random.normal(k_x2, (B2, S2, D2), dtype=jnp.float32)
    wd2 = jax.random.normal(k_w12, (D2, D2), dtype=jnp.float32) * 0.02
    bd2 = jax.random.normal(k_b12, (D2,), dtype=jnp.float32) * 0.02
    wo2 = jax.random.normal(k_w22, (L2, D2), dtype=jnp.float32) * 0.02
    bo2 = jax.random.normal(k_b22, (L2,), dtype=jnp.float32) * 0.02
    ref2 = _reference(hs2, wd2, bd2, wo2, bo2)
    w1, b1, w2, b2, nl2 = prepare_t5_head_params(wd2, bd2, wo2, bo2,
                                                 matmul_dtype=None)
    logits2 = t5_classification_head(hs2, w1, b1, w2, b2, num_labels=nl2,
                                     max_resident_w1_bytes=0)   # force tk=128
    jax.block_until_ready(logits2)
    assert logits2.shape == (B2, S2, L2), logits2.shape
    assert jnp.allclose(logits2, ref2, atol=1e-4, rtol=1e-4), "K-tiled path mismatch"

    print("KERNEL_OK")
</pallas_src>

<mosaic_0001>
module attributes {stable_mosaic.version = 11 : i64} {
  func.func @_head_kernel_fused(%arg0: i32, %arg1: memref<16x32xf32, #tpu.memory_space<vmem>>, %arg2: memref<32x32xf32, #tpu.memory_space<vmem>>, %arg3: memref<1x32xf32, #tpu.memory_space<vmem>>, %arg4: memref<32x128xf32, #tpu.memory_space<vmem>>, %arg5: memref<1x128xf32, #tpu.memory_space<vmem>>, %arg6: memref<16x128xf32, #tpu.memory_space<vmem>>) attributes {dimension_semantics = [#tpu.dimension_semantics<parallel>], iteration_bounds = array<i64: 1>, scalar_prefetch = 0 : i64, scratch_operands = 0 : i64, tpu.core_type = #tpu.core_type<tc>, window_params = [{transform_indices = @transform_0, window_bounds = array<i64: 16, 32>}, {pipeline_mode = #tpu.pipeline_mode<synchronous>, transform_indices = @transform_1, window_bounds = array<i64: 32, 32>}, {pipeline_mode = #tpu.pipeline_mode<synchronous>, transform_indices = @transform_2, window_bounds = array<i64: 1, 32>}, {pipeline_mode = #tpu.pipeline_mode<synchronous>, transform_indices = @transform_3, window_bounds = array<i64: 32, 128>}, {pipeline_mode = #tpu.pipeline_mode<synchronous>, transform_indices = @transform_4, window_bounds = array<i64: 1, 128>}, {transform_indices = @transform_5, window_bounds = array<i64: 16, 128>}]} {
    %c0 = arith.constant 0 : index
    %c0_0 = arith.constant 0 : index
    %0 = vector.load %arg1[%c0, %c0_0] : memref<16x32xf32, #tpu.memory_space<vmem>>, vector<16x32xf32>
    %c0_1 = arith.constant 0 : index
    %c0_2 = arith.constant 0 : index
    %1 = vector.load %arg2[%c0_1, %c0_2] : memref<32x32xf32, #tpu.memory_space<vmem>>, vector<32x32xf32>
    %cst = arith.constant dense<0.000000e+00> : vector<16x32xf32>
    %2 = tpu.matmul %0, %1, %cst {dimension_numbers = #tpu.dot_dimension_numbers<[1], [0], [0], [1], [0, 0, 1, 1], [], []>} : vector<16x32xf32>, vector<32x32xf32>, vector<16x32xf32> -> vector<16x32xf32>
    %c0_3 = arith.constant 0 : index
    %c0_4 = arith.constant 0 : index
    %3 = vector.load %arg3[%c0_3, %c0_4] : memref<1x32xf32, #tpu.memory_space<vmem>>, vector<1x32xf32>
    %4 = vector.broadcast %3 : vector<1x32xf32> to vector<16x32xf32>
    %5 = arith.addf %2, %4 : vector<16x32xf32>
    %6 = math.tanh %5 : vector<16x32xf32>
    %c0_5 = arith.constant 0 : index
    %c0_6 = arith.constant 0 : index
    %7 = vector.load %arg4[%c0_5, %c0_6] : memref<32x128xf32, #tpu.memory_space<vmem>>, vector<32x128xf32>
    %cst_7 = arith.constant dense<0.000000e+00> : vector<16x128xf32>
    %8 = tpu.matmul %6, %7, %cst_7 {dimension_numbers = #tpu.dot_dimension_numbers<[1], [0], [0], [1], [0, 0, 1, 1], [], []>} : vector<16x32xf32>, vector<32x128xf32>, vector<16x128xf32> -> vector<16x128xf32>
    %c0_8 = arith.constant 0 : index
    %c0_9 = arith.constant 0 : index
    %9 = vector.load %arg5[%c0_8, %c0_9] : memref<1x128xf32, #tpu.memory_space<vmem>>, vector<1x128xf32>
    %10 = vector.broadcast %9 : vector<1x128xf32> to vector<16x128xf32>
    %11 = arith.addf %8, %10 : vector<16x128xf32>
    %c0_10 = arith.constant 0 : index
    %c0_11 = arith.constant 0 : index
    %12 = vector.load %arg6[%c0_10, %c0_11] : memref<16x128xf32, #tpu.memory_space<vmem>>, vector<16x128xf32>
    tpu.vector_store %arg6[%c0_10, %c0_11], %11 {strides = array<i32>} : memref<16x128xf32, #tpu.memory_space<vmem>>, vector<16x128xf32>,
    return
  }
  func.func @transform_0(%arg0: i32) -> (i32, i32) {
    %c0_i32 = arith.constant 0 : i32
    %c0_i32_0 = arith.constant 0 : i32
    return %arg0, %c0_i32 : i32, i32
  }
  func.func @transform_1(%arg0: i32) -> (i32, i32) {
    %c0_i32 = arith.constant 0 : i32
    %c0_i32_0 = arith.constant 0 : i32
    %c0_i32_1 = arith.constant 0 : i32
    return %c0_i32, %c0_i32_0 : i32, i32
  }
  func.func @transform_2(%arg0: i32) -> (i32, i32) {
    %c0_i32 = arith.constant 0 : i32
    %c0_i32_0 = arith.constant 0 : i32
    %c0_i32_1 = arith.constant 0 : i32
    return %c0_i32, %c0_i32_0 : i32, i32
  }
  func.func @transform_3(%arg0: i32) -> (i32, i32) {
    %c0_i32 = arith.constant 0 : i32
    %c0_i32_0 = arith.constant 0 : i32
    %c0_i32_1 = arith.constant 0 : i32
    return %c0_i32, %c0_i32_0 : i32, i32
  }
  func.func @transform_4(%arg0: i32) -> (i32, i32) {
    %c0_i32 = arith.constant 0 : i32
    %c0_i32_0 = arith.constant 0 : i32
    %c0_i32_1 = arith.constant 0 : i32
    return %c0_i32, %c0_i32_0 : i32, i32
  }
  func.func @transform_5(%arg0: i32) -> (i32, i32) {
    %c0_i32 = arith.constant 0 : i32
    %c0_i32_0 = arith.constant 0 : i32
    return %arg0, %c0_i32 : i32, i32
  }
}

</mosaic_0001>

<llo_original>
// kernel: t5_classification_head.1
$region0: #{t5_classification_head.1}
  #allocation0 [shape = 'u32[]', space=smem, size = 0x4, offset = 0x4, fixed_abs, tag = 'smem constant byte address 0x4 - core index']
  #allocation1 [shape = 'u32[144,128]{1,0:T(1,128)}', space=vmem, size = 0x12000, scoped, tag = 'internal scratch']
  %s0 = inlined_call_operand.hbm [shape: f32[16,32], index: 0, kind: input, shape index: {}]
  %s1 = inlined_call_operand.hbm [shape: f32[32,32], index: 1, kind: input, shape index: {}]
  %s2 = inlined_call_operand.vmem [shape: f32[1,32], index: 2, kind: input, shape index: {}]
  %s3 = inlined_call_operand.hbm [shape: f32[32,128], index: 3, kind: input, shape index: {}]
  %s4 = inlined_call_operand.vmem [shape: f32[1,128], index: 4, kind: input, shape index: {}]
  %s5 = inlined_call_operand.vmem [shape: f32[16,128], index: 5, kind: output, shape index: {}]
  %s6 = sld [smem:[#allocation0]]
  $region42: #{t5_classification_head.1} parent=0
    _
  %s8 = ssub.s32 1, %s6
  %s9 = scalar_select 0, %s8, %s6
  $region1: #{t5_classification_head.1} parent=0
    #allocation2 [shape = 'u8[8192]{0}', space=vmem, size = 0x2000, scoped, tag = 'input window, operand 0, single buffered']
    #allocation3 [shape = 's32[1]{0}', space=sflag, size = 0x4, scoped, tag = 'scoped memory for t5_classification_head.1']
    #allocation4 [shape = 'u8[16384]{0}', space=vmem, size = 0x4000, scoped, tag = 'input window, operand 1, single buffered']
    #allocation5 [shape = 's32[1]{0}', space=sflag, size = 0x4, scoped, tag = 'scoped memory for t5_classification_head.1']
    #allocation6 [shape = 'u8[16384]{0}', space=vmem, size = 0x4000, scoped, tag = 'input window, operand 3, single buffered']
    %10 = vsyncpa [#allocation3], 0
    %11 = vsyncpa [#allocation5], 0
    // Predicated region
    $region2: #{t5_classification_head.1} parent=1 // pred_check
      _
    $region3: #{t5_classification_head.1} parent=1 // pred_check_branch
      %13 = sbr.rel (0) target = $region5
    $region4: #{t5_classification_head.1} parent=1 // pred_region
      %s15 = ssub.s32 256, 256
      %16 = vsyncadd [#allocation3], %s15
      %s17 = sshll.u32 [#allocation2], 4
      %s18 = int_to_ptr.vmem [resolvable:$true] %s17
      %23 = dma.hbm_to_vmem [thread:$0]  %s0, 256, %s18, [#allocation3], 128, 128, 8
    $region5: #{t5_classification_head.1} parent=1 // pred_fallthru
      _
    // Predicated region
    $region6: #{t5_classification_head.1} parent=1 // pred_check
      _
    $region7: #{t5_classification_head.1} parent=1 // pred_check_branch
      %25 = sbr.rel (0) target = $region9
    $region8: #{t5_classification_head.1} parent=1 // pred_region
      %s27 = ssub.s32 512, 512
      %28 = vsyncadd [#allocation5], %s27
      %s29 = sshll.u32 [#allocation4], 4
      %s30 = int_to_ptr.vmem [resolvable:$true] %s29
      %35 = dma.hbm_to_vmem [thread:$0]  %s1, 512, %s30, [#allocation5], 128, 128, 8
    $region9: #{t5_classification_head.1} parent=1 // pred_fallthru
      _
    // Predicated region
    $region10: #{t5_classification_head.1} parent=1 // pred_check
      _
    $region11: #{t5_classification_head.1} parent=1 // pred_check_branch
      %37 = sbr.rel (0) target = $region13
    $region12: #{t5_classification_head.1} parent=1 // pred_region
      _
    $region13: #{t5_classification_head.1} parent=1 // pred_fallthru
      _
    // Predicated region
    $region14: #{t5_classification_head.1} parent=1 // pred_check
      _
    $region15: #{t5_classification_head.1} parent=1 // pred_check_branch
      %39 = sbr.rel (0) target = $region17
    $region16: #{t5_classification_head.1} parent=1 // pred_region
      %s41 = ssub.s32 512, 512
      %42 = vsyncadd [#allocation5], %s41
      %s43 = sshll.u32 [#allocation6], 4
      %s44 = int_to_ptr.vmem [resolvable:$true] %s43
      %49 = dma.hbm_to_vmem [thread:$0]  %s3, 512, %s44, [#allocation5], 128, 128, 8
    $region17: #{t5_classification_head.1} parent=1 // pred_fallthru
      _
    // Predicated region
    $region18: #{t5_classification_head.1} parent=1 // pred_check
      _
    $region19: #{t5_classification_head.1} parent=1 // pred_check_branch
      %51 = sbr.rel (0) target = $region21
    $region20: #{t5_classification_head.1} parent=1 // pred_region
      _
    $region21: #{t5_classification_head.1} parent=1 // pred_fallthru
      _
    // Predicated region
    $region22: #{t5_classification_head.1} parent=1 // pred_check
      _
    $region23: #{t5_classification_head.1} parent=1 // pred_check_branch
      %53 = sbr.rel (0) target = $region25
    $region24: #{t5_classification_head.1} parent=1 // pred_region
      %54 = dma.done [#allocation3], 256
    $region25: #{t5_classification_head.1} parent=1 // pred_fallthru
      _
    // Predicated region
    $region26: #{t5_classification_head.1} parent=1 // pred_check
      _
    $region27: #{t5_classification_head.1} parent=1 // pred_check_branch
      %56 = sbr.rel (0) target = $region29
    $region28: #{t5_classification_head.1} parent=1 // pred_region
      %57 = dma.done [#allocation5], 512
    $region29: #{t5_classification_head.1} parent=1 // pred_fallthru
      _
    // Predicated region
    $region30: #{t5_classification_head.1} parent=1 // pred_check
      _
    $region31: #{t5_classification_head.1} parent=1 // pred_check_branch
      %59 = sbr.rel (0) target = $region33
    $region32: #{t5_classification_head.1} parent=1 // pred_region
      %60 = dma.done [#allocation5], 512
    $region33: #{t5_classification_head.1} parent=1 // pred_fallthru
      _
    %v61 = vld [vmem:[#allocation2] sm:$0xff]
    %v62 = vld [vmem:[#allocation2 + $0x8] sm:$0xff]
    %v63 = vld [vmem:[#allocation4] sm:$0xff]
    %v64 = vld [vmem:[#allocation4 + $0x8] sm:$0xff]
    %v65 = vld [vmem:[#allocation4 + $0x10] sm:$0xff]
    %v66 = vld [vmem:[#allocation4 + $0x18] sm:$0xff]
    %v67 = vld [vmem:[%s2] sm:$0x1]
    %v69 = vlaneseq
    %v70 = vshrl.u32 %v69, 7
    %v71 = vsub.s32 0, %v70
    %v72 = vrot.slane %v67, %v71
    %vm74 = vcmask 261120
    %v76 = vsel %vm74, %v61, 0
    %v79 = vsel %vm74, %v62, 0
    %81 = vmatprep.subr.mxu0 0.0
    %82 = vmatpush1.msra.mxu0 0.0
    %83 = vmatprep.subr.mxu0 0.0
    %84 = vmatpush1.msra.mxu0 0.0
    %85 = vmatprep.subr.mxu0 0.0
    %86 = vmatpush1.msra.mxu0 0.0
    %87 = vmatprep.subr.mxu0 0.0
    %88 = vmatpush1.msra.mxu0 0.0
    %89 = vmatprep.subr.mxu0 0.0
    %90 = vmatpush1.msra.mxu0 0.0
    %91 = vmatprep.subr.mxu0 0.0
    %92 = vmatpush1.msra.mxu0 0.0
    %93 = vmatprep.subr.mxu0 0.0
    %94 = vmatpush1.msra.mxu0 0.0
    %95 = vmatprep.subr.mxu0 0.0
    %96 = vmatpush1.msra.mxu0 0.0
    %97 = vmatprep.subr.mxu0 0.0
    %98 = vmatpush1.msra.mxu0 0.0
    %99 = vmatprep.subr.mxu0 0.0
    %100 = vmatpush1.msra.mxu0 0.0
    %101 = vmatprep.subr.mxu0 0.0
    %102 = vmatpush1.msra.mxu0 0.0
    %103 = vmatprep.subr.mxu0 0.0
    %104 = vmatpush1.msra.mxu0 0.0
    %105 = vmatprep.subr.mxu0 0.0
    %106 = vmatpush1.msra.mxu0 %v66
    %107 = vmatprep.subr.mxu0 0.0
    %108 = vmatpush1.msra.mxu0 %v65
    %109 = vmatprep.subr.mxu0 0.0
    %110 = vmatpush1.msra.mxu0 %v64
    %111 = vmatprep.subr.mxu0 0.0
    %112 = vmatpush1.msra.mxu0 %v63
    %113 = vmatprep.subr.mxu0 0.0
    %114 = vmatpush2.msra.mxu0 0.0
    %115 = vmatprep.subr.mxu0 0.0
    %116 = vmatpush2.msra.mxu0 0.0
    %117 = vmatprep.subr.mxu0 0.0
    %118 = vmatpush2.msra.mxu0 0.0
    %119 = vmatprep.subr.mxu0 0.0
    %120 = vmatpush2.msra.mxu0 0.0
    %121 = vmatprep.subr.mxu0 0.0
    %122 = vmatpush2.msra.mxu0 0.0
    %123 = vmatprep.subr.mxu0 0.0
    %124 = vmatpush2.msra.mxu0 0.0
    %125 = vmatprep.subr.mxu0 0.0
    %126 = vmatpush2.msra.mxu0 0.0
    %127 = vmatprep.subr.mxu0 0.0
    %128 = vmatpush2.msra.mxu0 0.0
    %129 = vmatprep.subr.mxu0 0.0
    %130 = vmatpush2.msra.mxu0 0.0
    %131 = vmatprep.subr.mxu0 0.0
    %132 = vmatpush2.msra.mxu0 0.0
    %133 = vmatprep.subr.mxu0 0.0
    %134 = vmatpush2.msra.mxu0 0.0
    %135 = vmatprep.subr.mxu0 0.0
    %136 = vmatpush2.msra.mxu0 0.0
    %137 = vmatprep.subr.mxu0 0.0
    %138 = vmatpush2.msra.mxu0 0.0
    %139 = vmatprep.subr.mxu0 0.0
    %140 = vmatpush2.msra.mxu0 0.0
    %141 = vmatprep.subr.mxu0 0.0
    %142 = vmatpush2.msra.mxu0 0.0
    %143 = vmatprep.subr.mxu0 0.0
    %144 = vmatpush2.msra.mxu0 0.0
    %145 = vmatprep.mubr.f32.mxu0 0.0
    %146 = vmatmul.mubr.f32.gmra.mxu0 %v76
    %v147 = vpop.f32.mrf.mxu0
    %v148 = vadd.f32 %v72, %v147
    %v149 = vpop.f32.mrf.mxu0
    %150 = vmatprep.mubr.f32.mxu0 0.0
    %151 = vmatmul.mubr.f32.gmra.mxu0 %v79
    %v152 = vpop.f32.mrf.mxu0
    %v153 = vadd.f32 %v72, %v152
    %v154 = vpop.f32.mrf.mxu0
    %155 = vdwg.mxu0
    %v156 = vtanh.pop %v148
    %v157 = vtanh.pop %v153
    %v158 = vld [vmem:[#allocation6] sm:$0xff]
    %v159 = vld [vmem:[#allocation6 + $0x8] sm:$0xff]
    %v160 = vld [vmem:[#allocation6 + $0x10] sm:$0xff]
    %v161 = vld [vmem:[#allocation6 + $0x18] sm:$0xff]
    %v162 = vld [vmem:[%s4] sm:$0x1]
    %v164 = vlaneseq
    %v165 = vshrl.u32 %v164, 7
    %v166 = vsub.s32 0, %v165
    %v167 = vrot.slane %v162, %v166
    %v170 = vsel %vm74, %v156, 0
    %v173 = vsel %vm74, %v157, 0
    %175 = vmatprep.subr.mxu0 0.0
    %176 = vmatpush1.msra.mxu0 0.0
    %177 = vmatprep.subr.mxu0 0.0
    %178 = vmatpush1.msra.mxu0 0.0
    %179 = vmatprep.subr.mxu0 0.0
    %180 = vmatpush1.msra.mxu0 0.0
    %181 = vmatprep.subr.mxu0 0.0
    %182 = vmatpush1.msra.mxu0 0.0
    %183 = vmatprep.subr.mxu0 0.0
    %184 = vmatpush1.msra.mxu0 0.0
    %185 = vmatprep.subr.mxu0 0.0
    %186 = vmatpush1.msra.mxu0 0.0
    %187 = vmatprep.subr.mxu0 0.0
    %188 = vmatpush1.msra.mxu0 0.0
    %189 = vmatprep.subr.mxu0 0.0
    %190 = vmatpush1.msra.mxu0 0.0
    %191 = vmatprep.subr.mxu0 0.0
    %192 = vmatpush1.msra.mxu0 0.0
    %193 = vmatprep.subr.mxu0 0.0
    %194 = vmatpush1.msra.mxu0 0.0
    %195 = vmatprep.subr.mxu0 0.0
    %196 = vmatpush1.msra.mxu0 0.0
    %197 = vmatprep.subr.mxu0 0.0
    %198 = vmatpush1.msra.mxu0 0.0
    %199 = vmatprep.subr.mxu0 0.0
    %200 = vmatpush1.msra.mxu0 %v161
    %201 = vmatprep.subr.mxu0 0.0
    %202 = vmatpush1.msra.mxu0 %v160
    %203 = vmatprep.subr.mxu0 0.0
    %204 = vmatpush1.msra.mxu0 %v159
    %205 = vmatprep.subr.mxu0 0.0
    %206 = vmatpush1.msra.mxu0 %v158
    %207 = vmatprep.subr.mxu0 0.0
    %208 = vmatpush2.msra.mxu0 0.0
    %209 = vmatprep.subr.mxu0 0.0
    %210 = vmatpush2.msra.mxu0 0.0
    %211 = vmatprep.subr.mxu0 0.0
    %212 = vmatpush2.msra.mxu0 0.0
    %213 = vmatprep.subr.mxu0 0.0
    %214 = vmatpush2.msra.mxu0 0.0
    %215 = vmatprep.subr.mxu0 0.0
    %216 = vmatpush2.msra.mxu0 0.0
    %217 = vmatprep.subr.mxu0 0.0
    %218 = vmatpush2.msra.mxu0 0.0
    %219 = vmatprep.subr.mxu0 0.0
    %220 = vmatpush2.msra.mxu0 0.0
    %221 = vmatprep.subr.mxu0 0.0
    %222 = vmatpush2.msra.mxu0 0.0
    %223 = vmatprep.subr.mxu0 0.0
    %224 = vmatpush2.msra.mxu0 0.0
    %225 = vmatprep.subr.mxu0 0.0
    %226 = vmatpush2.msra.mxu0 0.0
    %227 = vmatprep.subr.mxu0 0.0
    %228 = vmatpush2.msra.mxu0 0.0
    %229 = vmatprep.subr.mxu0 0.0
    %230 = vmatpush2.msra.mxu0 0.0
    %231 = vmatprep.subr.mxu0 0.0
    %232 = vmatpush2.msra.mxu0 0.0
    %233 = vmatprep.subr.mxu0 0.0
    %234 = vmatpush2.msra.mxu0 0.0
    %235 = vmatprep.subr.mxu0 0.0
    %236 = vmatpush2.msra.mxu0 0.0
    %237 = vmatprep.subr.mxu0 0.0
    %238 = vmatpush2.msra.mxu0 0.0
    %239 = vmatprep.mubr.f32.mxu0 0.0
    %240 = vmatmul.mubr.f32.gmra.mxu0 %v170
    %v241 = vpop.f32.mrf.mxu0
    %v242 = vadd.f32 %v167, %v241
    %v243 = vpop.f32.mrf.mxu0
    %244 = vmatprep.mubr.f32.mxu0 0.0
    %245 = vmatmul.mubr.f32.gmra.mxu0 %v173
    %v246 = vpop.f32.mrf.mxu0
    %v247 = vadd.f32 %v167, %v246
    %v248 = vpop.f32.mrf.mxu0
    %249 = vdwg.mxu0
    %250 = vst [vmem:[%s5] sm:$0xff] %v242
    %251 = vst [vmem:[%s5 + $0x8] sm:$0xff] %v247
    // Predicated region
    $region34: #{t5_classification_head.1} parent=1 // pred_check
      _
    $region35: #{t5_classification_head.1} parent=1 // pred_check_branch
      %253 = sbr.rel (0) target = $region37
    $region36: #{t5_classification_head.1} parent=1 // pred_region
      _
    $region37: #{t5_classification_head.1} parent=1 // pred_fallthru
      _
    // Predicated region
    $region38: #{t5_classification_head.1} parent=1 // pred_check
      _
    $region39: #{t5_classification_head.1} parent=1 // pred_check_branch
      %255 = sbr.rel (0) target = $region41
    $region40: #{t5_classification_head.1} parent=1 // pred_region
      _
    $region41: #{t5_classification_head.1} parent=1 // pred_fallthru
      _
    %256 = vsyncpa [#allocation3], 1
    %257 = vsyncpa [#allocation5], 1

</llo_original>
